<compile_context>
chip_gen: v7x
topology: tpu7x:2x2x1
jax: 0.10.0
libtpu: 0.0.40
codegen_flags: <defaults>
</compile_context>

<pallas_src>
import functools

import jax
import jax.numpy as jnp
from jax.experimental import pallas as pl
from jax.experimental.pallas import tpu as pltpu


# ---------------------------------------------------------------------------
# Pass 1: BN batch statistics straight from x (no y round trip through HBM).
#   xp : (Mp, Kp)   tile (TMp, Kp)      packed input, Kp = W*Ci (128 here)
#   ws : (Kp, Cst)  full block          Cst = Co*4W, columns (co, di, j', dj)
#   st : (3, Cst)   resident block      row0 = per-column shift (first-tile
#                                       mean), row1 = sum(y-shift),
#                                       row2 = sum((y-shift)^2)
# The conv bias is excluded here and folded back in analytically (it shifts
# the mean and cancels in the variance).
# ---------------------------------------------------------------------------
def _stats_kernel(xp_ref, ws_ref, st_ref):
    t = pl.program_id(0)
    y = jnp.dot(xp_ref[...], ws_ref[...], preferred_element_type=jnp.float32)

    @pl.when(t == 0)
    def _init():
        st_ref[0:1, :] = jnp.mean(y, axis=0, keepdims=True)      # shift
        st_ref[1:3, :] = jnp.zeros((2, st_ref.shape[1]), jnp.float32)

    d = y - st_ref[0:1, :]
    st_ref[1:2, :] += jnp.sum(d, axis=0, keepdims=True)
    st_ref[2:3, :] += jnp.sum(d * d, axis=0, keepdims=True)


# ---------------------------------------------------------------------------
# Pass 2: fused conv-transpose + BN + ReLU, one (n, co, row-block) tile per
# grid step.  Output columns are ordered (di, 2j+dj) so the (N, Co, H, 4W)
# result reshapes to NCHW for free.
#   xp_ref    : (TI, Kp)      packed input rows for this (n, row-block)
#   wb_ref    : (Kp, 4W)      per-channel structured-sparse weight
#   scale/off : (1, 4W)       per-channel BN scale and (bias+BN) shift
#   o_ref     : (TI, 4W)
# ---------------------------------------------------------------------------
def _convbnrelu_kernel(xp_ref, wb_ref, scale_ref, off_ref, o_ref):
    y = jnp.dot(xp_ref[...], wb_ref[...], preferred_element_type=jnp.float32)
    o_ref[...] = jnp.maximum(y * scale_ref[...] + off_ref[...], 0.0)


def _pick_tile(extent, target, multiple=8):
    """Largest tile <= target that divides `extent` and is a multiple of
    `multiple`; falls back to the full extent (block == full dim is legal)."""
    t = min(extent, target)
    t -= t % multiple
    while t >= multiple and extent % t != 0:
        t -= multiple
    return t if t >= multiple else extent


@functools.partial(jax.jit, static_argnames=("eps",))
def upsample_forward(x_nchw, w, b, gamma, beta, eps=1e-5):
    """Forward pass of Upsample(ch_in). x_nchw: (N, Cin, H, W) float32."""
    N, Ci, H, W = x_nchw.shape
    Co = Ci // 2
    FW = 4 * W                  # one output double-row (2, 2W) flattened
    Kp = W * Ci                 # packed row width (128 for the demo shapes)
    Mp = N * H
    Cst = Co * FW

    f32 = jnp.float32
    x_nchw = x_nchw.astype(f32)
    w = w.astype(f32)
    b = b.astype(f32)
    gamma = gamma.astype(f32)
    beta = beta.astype(f32)

    # ---- spatially packed input: row (n, i) holds x[n, :, i, :] as (j, ci) --
    xp = jnp.transpose(x_nchw, (0, 2, 3, 1)).reshape(Mp, Kp)
    xp3 = xp.reshape(N, H, Kp)

    # ---- structured-sparse weights (built once, tiny) -----------------------
    # WB[co, j*Ci + ci, di*2W + 2j' + dj] = w[ci, co, di, dj] * (j == j')
    eye_w = jnp.eye(W, dtype=f32)
    WB = jnp.einsum("codk,jl->ojcdlk", w, eye_w).reshape(Co, Kp, FW)
    # stats weight: all channels side by side, columns (co, di, j', dj)
    Ws = jnp.transpose(WB, (1, 0, 2)).reshape(Kp, Cst)

    # ========================================================================
    # Pass 1: shifted sums / sums-of-squares of the conv output, accumulated
    # in the resident (3, Cst) output block (grid axis is sequential).
    # ========================================================================
    TMp = _pick_tile(Mp, min(512, max(8, Mp // 4)))
    Gs = Mp // TMp

    st = pl.pallas_call(
        _stats_kernel,
        out_shape=jax.ShapeDtypeStruct((3, Cst), f32),
        grid=(Gs,),
        in_specs=[
            pl.BlockSpec((TMp, Kp), lambda t: (t, 0)),
            pl.BlockSpec((Kp, Cst), lambda t: (0, 0)),
        ],
        out_specs=pl.BlockSpec((3, Cst), lambda t: (0, 0)),
        compiler_params=pltpu.CompilerParams(
            dimension_semantics=("arbitrary",)),
    )(xp, Ws)

    # ---- tiny fold to per-channel mean / variance (centered, robust) -------
    rows = jnp.float32(Mp)
    cnt = jnp.float32(Mp * FW)                      # = N * 2H * 2W per channel
    a = st[0].reshape(Co, FW)                       # per-column shifts
    s1 = st[1].reshape(Co, FW)                      # sum(y - a)
    s2 = st[2].reshape(Co, FW)                      # sum((y - a)^2)
    mean_nob = (a * rows + s1).sum(axis=1) / cnt    # channel mean (no bias)
    diff = a - mean_nob[:, None]
    var = (s2 + 2.0 * diff * s1 + rows * diff * diff).sum(axis=1) / cnt
    mean = mean_nob + b                             # + conv bias
    scale = gamma / jnp.sqrt(var + eps)             # BN scale (training stats)
    off = beta + scale * (b - mean)                 # conv bias + BN shift fused

    scale_in = jnp.broadcast_to(scale[:, None, None], (Co, 1, FW))
    off_in = jnp.broadcast_to(off[:, None, None], (Co, 1, FW))

    # ========================================================================
    # Pass 2: fused conv-transpose + BN + ReLU, NCHW-compatible output layout.
    # ========================================================================
    TI = _pick_tile(H, min(64, max(8, H // 2)))
    GI = H // TI

    out4 = pl.pallas_call(
        _convbnrelu_kernel,
        out_shape=jax.ShapeDtypeStruct((N, Co, H, FW), f32),
        grid=(N, Co, GI),
        in_specs=[
            pl.BlockSpec((None, TI, Kp), lambda n, c, i: (n, i, 0)),
            pl.BlockSpec((None, Kp, FW), lambda n, c, i: (c, 0, 0)),
            pl.BlockSpec((None, 1, FW), lambda n, c, i: (c, 0, 0)),
            pl.BlockSpec((None, 1, FW), lambda n, c, i: (c, 0, 0)),
        ],
        out_specs=pl.BlockSpec((None, None, TI, FW),
                               lambda n, c, i: (n, c, i, 0)),
        compiler_params=pltpu.CompilerParams(
            dimension_semantics=("parallel", "parallel", "parallel")),
    )(xp3, WB, scale_in, off_in)

    # (N, Co, H, 4W) -> (N, Co, 2H, 2W): adjacent-dim split, free reshape.
    return out4.reshape(N, Co, 2 * H, 2 * W)


# ---------------------------------------------------------------------------
# Pure-JAX reference (same math, no Pallas) for a correctness check.
# ---------------------------------------------------------------------------
def reference_forward(x_nchw, w, b, gamma, beta, eps=1e-5):
    N, Ci, H, Wd = x_nchw.shape
    Co = Ci // 2
    # out[n, co, 2i+di, 2j+dj] = sum_ci x[n,ci,i,j] * w[ci,co,di,dj] + b[co]
    y = jnp.einsum("nchw,cokl->nohkwl", x_nchw, w)            # (N,Co,H,2,W,2)
    y = y.reshape(N, Co, 2 * H, 2 * Wd) + b[None, :, None, None]
    mean = jnp.mean(y, axis=(0, 2, 3), keepdims=True)
    var = jnp.mean(jnp.square(y - mean), axis=(0, 2, 3), keepdims=True)
    yn = (y - mean) / jnp.sqrt(var + eps)
    yn = yn * gamma[None, :, None, None] + beta[None, :, None, None]
    return jnp.maximum(yn, 0.0)


if __name__ == "__main__":
    key = jax.random.PRNGKey(0)
    k_x, k_w, k_b, k_g, k_be = jax.random.split(key, 5)

    N, CH_IN, H, W = 2, 8, 16, 16
    CH_OUT = CH_IN // 2

    x = jax.random.normal(k_x, (N, CH_IN, H, W), dtype=jnp.float32)
    # ConvTranspose2d weight layout: (Cin, Cout, 2, 2)
    w_ct = 0.1 * jax.random.normal(k_w, (CH_IN, CH_OUT, 2, 2), dtype=jnp.float32)
    b_ct = 0.1 * jax.random.normal(k_b, (CH_OUT,), dtype=jnp.float32)
    gamma = 1.0 + 0.1 * jax.random.normal(k_g, (CH_OUT,), dtype=jnp.float32)
    beta = 0.1 * jax.random.normal(k_be, (CH_OUT,), dtype=jnp.float32)

    out = upsample_forward(x, w_ct, b_ct, gamma, beta)
    out = jax.block_until_ready(out)

    ref = reference_forward(x, w_ct, b_ct, gamma, beta)
    assert out.shape == (N, CH_OUT, 2 * H, 2 * W), out.shape
    err = float(jnp.max(jnp.abs(out - ref)))
    assert err < 1e-4, err

    print("KERNEL_OK")
</pallas_src>

<mosaic_0001>
module attributes {stable_mosaic.version = 11 : i64} {
  func.func @_stats_kernel(%arg0: i32, %arg1: memref<8x128xf32, #tpu.memory_space<vmem>>, %arg2: memref<128x256xf32, #tpu.memory_space<vmem>>, %arg3: memref<3x256xf32, #tpu.memory_space<vmem>>) attributes {dimension_semantics = [#tpu.dimension_semantics<arbitrary>], iteration_bounds = array<i64: 4>, scalar_prefetch = 0 : i64, scratch_operands = 0 : i64, tpu.core_type = #tpu.core_type<tc>, window_params = [{transform_indices = @transform_0, window_bounds = array<i64: 8, 128>}, {pipeline_mode = #tpu.pipeline_mode<synchronous>, transform_indices = @transform_1, window_bounds = array<i64: 128, 256>}, {pipeline_mode = #tpu.pipeline_mode<synchronous>, transform_indices = @transform_2, window_bounds = array<i64: 3, 256>}]} {
    %c0 = arith.constant 0 : index
    %c0_0 = arith.constant 0 : index
    %0 = vector.load %arg1[%c0, %c0_0] : memref<8x128xf32, #tpu.memory_space<vmem>>, vector<8x128xf32>
    %c0_1 = arith.constant 0 : index
    %c0_2 = arith.constant 0 : index
    %1 = vector.load %arg2[%c0_1, %c0_2] : memref<128x256xf32, #tpu.memory_space<vmem>>, vector<128x256xf32>
    %cst = arith.constant dense<0.000000e+00> : vector<8x256xf32>
    %2 = tpu.matmul %0, %1, %cst {dimension_numbers = #tpu.dot_dimension_numbers<[1], [0], [0], [1], [0, 0, 1, 1], [], []>} : vector<8x128xf32>, vector<128x256xf32>, vector<8x256xf32> -> vector<8x256xf32>
    %c0_i32 = arith.constant 0 : i32
    %3 = arith.cmpi eq, %arg0, %c0_i32 : i32
    %4 = arith.extui %3 : i1 to i32
    %c0_i32_3 = arith.constant 0 : i32
    %5 = arith.cmpi ne, %4, %c0_i32_3 : i32
    scf.if %5 {
      %cst_14 = arith.constant dense<0.000000e+00> : vector<256xf32>
      %20 = vector.multi_reduction <add>, %2, %cst_14 [0] : vector<8x256xf32> to vector<256xf32>
      %21 = vector.shape_cast %20 : vector<256xf32> to vector<1x256xf32>
      %cst_15 = arith.constant 8.000000e+00 : f32
      %22 = vector.broadcast %cst_15 : f32 to vector<1x256xf32>
      %23 = arith.divf %21, %22 : vector<1x256xf32>
      %c0_16 = arith.constant 0 : index
      %c0_17 = arith.constant 0 : index
      %24 = vector.load %arg3[%c0_16, %c0_17] : memref<3x256xf32, #tpu.memory_space<vmem>>, vector<1x256xf32>
      tpu.vector_store %arg3[%c0_16, %c0_17], %23 {strides = array<i32>} : memref<3x256xf32, #tpu.memory_space<vmem>>, vector<1x256xf32>,
      %cst_18 = arith.constant 0.000000e+00 : f32
      %25 = vector.broadcast %cst_18 : f32 to vector<2x256xf32>
      %c1_19 = arith.constant 1 : index
      %c0_20 = arith.constant 0 : index
      %26 = vector.load %arg3[%c1_19, %c0_20] : memref<3x256xf32, #tpu.memory_space<vmem>>, vector<2x256xf32>
      tpu.vector_store %arg3[%c1_19, %c0_20], %25 {strides = array<i32>} : memref<3x256xf32, #tpu.memory_space<vmem>>, vector<2x256xf32>,
    } else {
    }
    %c0_4 = arith.constant 0 : index
    %c0_5 = arith.constant 0 : index
    %6 = vector.load %arg3[%c0_4, %c0_5] : memref<3x256xf32, #tpu.memory_space<vmem>>, vector<1x256xf32>
    %7 = vector.broadcast %6 : vector<1x256xf32> to vector<8x256xf32>
    %8 = arith.subf %2, %7 : vector<8x256xf32>
    %c1 = arith.constant 1 : index
    %c0_6 = arith.constant 0 : index
    %9 = vector.load %arg3[%c1, %c0_6] : memref<3x256xf32, #tpu.memory_space<vmem>>, vector<1x256xf32>
    %cst_7 = arith.constant dense<0.000000e+00> : vector<256xf32>
    %10 = vector.multi_reduction <add>, %8, %cst_7 [0] : vector<8x256xf32> to vector<256xf32>
    %11 = vector.shape_cast %10 : vector<256xf32> to vector<1x256xf32>
    %12 = arith.addf %9, %11 : vector<1x256xf32>
    %c1_8 = arith.constant 1 : index
    %c0_9 = arith.constant 0 : index
    %13 = vector.load %arg3[%c1_8, %c0_9] : memref<3x256xf32, #tpu.memory_space<vmem>>, vector<1x256xf32>
    tpu.vector_store %arg3[%c1_8, %c0_9], %12 {strides = array<i32>} : memref<3x256xf32, #tpu.memory_space<vmem>>, vector<1x256xf32>,
    %c2 = arith.constant 2 : index
    %c0_10 = arith.constant 0 : index
    %14 = vector.load %arg3[%c2, %c0_10] : memref<3x256xf32, #tpu.memory_space<vmem>>, vector<1x256xf32>
    %15 = arith.mulf %8, %8 : vector<8x256xf32>
    %cst_11 = arith.constant dense<0.000000e+00> : vector<256xf32>
    %16 = vector.multi_reduction <add>, %15, %cst_11 [0] : vector<8x256xf32> to vector<256xf32>
    %17 = vector.shape_cast %16 : vector<256xf32> to vector<1x256xf32>
    %18 = arith.addf %14, %17 : vector<1x256xf32>
    %c2_12 = arith.constant 2 : index
    %c0_13 = arith.constant 0 : index
    %19 = vector.load %arg3[%c2_12, %c0_13] : memref<3x256xf32, #tpu.memory_space<vmem>>, vector<1x256xf32>
    tpu.vector_store %arg3[%c2_12, %c0_13], %18 {strides = array<i32>} : memref<3x256xf32, #tpu.memory_space<vmem>>, vector<1x256xf32>,
    return
  }
  func.func @transform_0(%arg0: i32) -> (i32, i32) {
    %c0_i32 = arith.constant 0 : i32
    %c0_i32_0 = arith.constant 0 : i32
    return %arg0, %c0_i32 : i32, i32
  }
  func.func @transform_1(%arg0: i32) -> (i32, i32) {
    %c0_i32 = arith.constant 0 : i32
    %c0_i32_0 = arith.constant 0 : i32
    %c0_i32_1 = arith.constant 0 : i32
    return %c0_i32, %c0_i32_0 : i32, i32
  }
  func.func @transform_2(%arg0: i32) -> (i32, i32) {
    %c0_i32 = arith.constant 0 : i32
    %c0_i32_0 = arith.constant 0 : i32
    %c0_i32_1 = arith.constant 0 : i32
    return %c0_i32, %c0_i32_0 : i32, i32
  }
}

module attributes {stable_mosaic.version = 11 : i64} {
  func.func @_convbnrelu_kernel(%arg0: i32, %arg1: i32, %arg2: i32, %arg3: memref<1x8x128xf32, #tpu.memory_space<vmem>>, %arg4: memref<1x128x64xf32, #tpu.memory_space<vmem>>, %arg5: memref<1x1x64xf32, #tpu.memory_space<vmem>>, %arg6: memref<1x1x64xf32, #tpu.memory_space<vmem>>, %arg7: memref<1x1x8x64xf32, #tpu.memory_space<vmem>>) attributes {dimension_semantics = [#tpu.dimension_semantics<parallel>, #tpu.dimension_semantics<parallel>, #tpu.dimension_semantics<parallel>], iteration_bounds = array<i64: 2, 4, 2>, scalar_prefetch = 0 : i64, scratch_operands = 0 : i64, tpu.core_type = #tpu.core_type<tc>, window_params = [{transform_indices = @transform_0, window_bounds = array<i64: 1, 8, 128>}, {transform_indices = @transform_1, window_bounds = array<i64: 1, 128, 64>}, {transform_indices = @transform_2, window_bounds = array<i64: 1, 1, 64>}, {transform_indices = @transform_3, window_bounds = array<i64: 1, 1, 64>}, {transform_indices = @transform_4, window_bounds = array<i64: 1, 1, 8, 64>}]} {
    %c0 = arith.constant 0 : index
    %c0_0 = arith.constant 0 : index
    %c0_1 = arith.constant 0 : index
    %0 = vector.load %arg3[%c0, %c0_0, %c0_1] : memref<1x8x128xf32, #tpu.memory_space<vmem>>, vector<1x8x128xf32>
    %1 = vector.shape_cast %0 : vector<1x8x128xf32> to vector<8x128xf32>
    %c0_2 = arith.constant 0 : index
    %c0_3 = arith.constant 0 : index
    %c0_4 = arith.constant 0 : index
    %2 = vector.load %arg4[%c0_2, %c0_3, %c0_4] : memref<1x128x64xf32, #tpu.memory_space<vmem>>, vector<1x128x64xf32>
    %3 = vector.shape_cast %2 : vector<1x128x64xf32> to vector<128x64xf32>
    %cst = arith.constant dense<0.000000e+00> : vector<8x64xf32>
    %4 = tpu.matmul %1, %3, %cst {dimension_numbers = #tpu.dot_dimension_numbers<[1], [0], [0], [1], [0, 0, 1, 1], [], []>} : vector<8x128xf32>, vector<128x64xf32>, vector<8x64xf32> -> vector<8x64xf32>
    %c0_5 = arith.constant 0 : index
    %c0_6 = arith.constant 0 : index
    %c0_7 = arith.constant 0 : index
    %5 = vector.load %arg5[%c0_5, %c0_6, %c0_7] : memref<1x1x64xf32, #tpu.memory_space<vmem>>, vector<1x1x64xf32>
    %6 = vector.shape_cast %5 : vector<1x1x64xf32> to vector<1x64xf32>
    %7 = vector.broadcast %6 : vector<1x64xf32> to vector<8x64xf32>
    %8 = arith.mulf %4, %7 : vector<8x64xf32>
    %c0_8 = arith.constant 0 : index
    %c0_9 = arith.constant 0 : index
    %c0_10 = arith.constant 0 : index
    %9 = vector.load %arg6[%c0_8, %c0_9, %c0_10] : memref<1x1x64xf32, #tpu.memory_space<vmem>>, vector<1x1x64xf32>
    %10 = vector.shape_cast %9 : vector<1x1x64xf32> to vector<1x64xf32>
    %11 = vector.broadcast %10 : vector<1x64xf32> to vector<8x64xf32>
    %12 = arith.addf %8, %11 : vector<8x64xf32>
    %cst_11 = arith.constant 0.000000e+00 : f32
    %13 = vector.broadcast %cst_11 : f32 to vector<8x64xf32>
    %14 = arith.maximumf %12, %13 : vector<8x64xf32>
    %c0_12 = arith.constant 0 : index
    %c0_13 = arith.constant 0 : index
    %c0_14 = arith.constant 0 : index
    %c0_15 = arith.constant 0 : index
    %15 = vector.load %arg7[%c0_12, %c0_13, %c0_14, %c0_15] : memref<1x1x8x64xf32, #tpu.memory_space<vmem>>, vector<1x1x8x64xf32>
    %16 = vector.shape_cast %15 : vector<1x1x8x64xf32> to vector<8x64xf32>
    %17 = vector.shape_cast %14 : vector<8x64xf32> to vector<1x1x8x64xf32>
    tpu.vector_store %arg7[%c0_12, %c0_13, %c0_14, %c0_15], %17 {strides = array<i32>} : memref<1x1x8x64xf32, #tpu.memory_space<vmem>>, vector<1x1x8x64xf32>,
    return
  }
  func.func @transform_0(%arg0: i32, %arg1: i32, %arg2: i32) -> (i32, i32, i32) {
    %c0_i32 = arith.constant 0 : i32
    %c0_i32_0 = arith.constant 0 : i32
    return %arg0, %arg2, %c0_i32 : i32, i32, i32
  }
  func.func @transform_1(%arg0: i32, %arg1: i32, %arg2: i32) -> (i32, i32, i32) {
    %c0_i32 = arith.constant 0 : i32
    %c0_i32_0 = arith.constant 0 : i32
    %c0_i32_1 = arith.constant 0 : i32
    return %arg1, %c0_i32, %c0_i32_0 : i32, i32, i32
  }
  func.func @transform_2(%arg0: i32, %arg1: i32, %arg2: i32) -> (i32, i32, i32) {
    %c0_i32 = arith.constant 0 : i32
    %c0_i32_0 = arith.constant 0 : i32
    %c0_i32_1 = arith.constant 0 : i32
    return %arg1, %c0_i32, %c0_i32_0 : i32, i32, i32
  }
  func.func @transform_3(%arg0: i32, %arg1: i32, %arg2: i32) -> (i32, i32, i32) {
    %c0_i32 = arith.constant 0 : i32
    %c0_i32_0 = arith.constant 0 : i32
    %c0_i32_1 = arith.constant 0 : i32
    return %arg1, %c0_i32, %c0_i32_0 : i32, i32, i32
  }
  func.func @transform_4(%arg0: i32, %arg1: i32, %arg2: i32) -> (i32, i32, i32, i32) {
    %c0_i32 = arith.constant 0 : i32
    %c0_i32_0 = arith.constant 0 : i32
    return %arg0, %arg1, %arg2, %c0_i32 : i32, i32, i32, i32
  }
}

</mosaic_0001>

<llo_original>
// kernel: squeeze.3
$region0: #{squeeze.3}
  %s0 = inlined_call_operand.vmem [shape: f32[256], index: 0, kind: input, shape index: {}]
  %s1 = inlined_call_operand.vmem [shape: f32[4,64], index: 1, kind: output, shape index: {}]
  $region1: #{squeeze.3} parent=0
    #allocation0 [shape = 'u8[4096]{0}', space=vmem, size = 0x1000, scoped, tag = 'scoped mem for output reshape']
    #allocation1 [shape = 'u8[4096]{0}', space=vmem, size = 0x1000, scoped, tag = 'scoped mem for input reshape']
    %s3 = sshllo.u32 0, 2
    %v4 = vld [vmem:[%s0] sm:%s3]
    %5 = vst [vmem:[#allocation1] sm:%s3] %v4
    %v6 = vld [vmem:[#allocation1] sm:$0x3]
    %vm7 = vcmask 523264
    %8 = vst.msk [vmem:[#allocation0] ss:$2 sm:$0x3] %vm7, %v6
    %v9 = vld [vmem:[#allocation1] sm:$0x3]
    %10 = vrot.lane.b32.xlu0 %v9, 64
    %v11 = vpop.permute.xlu0 %10
    %vm12 = vcmask 523264
    %s13 = scalar_lea.vmem [#allocation0], 1
    %14 = vst.msk [vmem:[%s13] ss:$2 sm:$0x3] %vm12, %v11
    %s16 = sshllo.u32 0, 4
    %v18 = vld [vmem:[#allocation0] sm:%s16]
    %s19 = sshllo.u32 0, 4
    %20 = vst [vmem:[%s1] sm:%s19] %v18

// kernel: upsample_forward.2
$region0: #{upsample_forward.2}
  #allocation0 [shape = 'u32[]', space=smem, size = 0x4, offset = 0x4, fixed_abs, tag = 'smem constant byte address 0x4 - core index']
  #allocation1 [shape = 'u32[144,128]{1,0:T(1,128)}', space=vmem, size = 0x12000, scoped, tag = 'internal scratch']
  %s0 = inlined_call_operand.vmem [shape: f32[32,128], index: 0, kind: input, shape index: {}]
  %s1 = inlined_call_operand.vmem [shape: f32[128,256], index: 1, kind: input, shape index: {}]
  %s2 = inlined_call_operand.vmem [shape: f32[3,256], index: 2, kind: output, shape index: {}]
  %s3 = sld [smem:[#allocation0]]
  $region45: #{upsample_forward.2} parent=0
    _
  %s5 = ssub.s32 1, %s3
  %s6 = scalar_select 0, %s5, %s3
  loop: start=0, step=1, limit=6
  $region2: #{upsample_forward.2} parent=0 // loop_pre_header
    _
  $region3: #{upsample_forward.2} parent=0 // loop_header
    %s8 = sphi 0, %s12
    %p9 = scmp.ge.s32.totalorder %s8, 6
    %s18 = sphi 0, %s20
    %s21 = sphi 0, %s18
    %s22 = sphi 0, %s21
    %s38 = sphi 0, %s22
    %s42 = sphi 0, %s42
    %s44 = sphi 0, %s42
    %s45 = sphi 0, %s44
    %s59 = sphi 0, %s45
    %s63 = sphi 0, %s63
    %s65 = sphi 0, %s63
    %s66 = sphi 0, %s65
    %s80 = sphi 0, %s66
  $region4: #{upsample_forward.2} parent=0 // loop_header_branch
    %11 = sbr.rel (%p9) target = $region8
  $region5: #{upsample_forward.2} parent=0 // loop_body
    %s13 = ssub.s32 %s8, 1
    %s14 = ssub.s32 %s8, 2
    %s15 = sadd.s32 %s8, 1
    %s16 = ssub.s32 %s8, %s15
    %p17 = scmp.eq.s32.totalorder %s16, 0
    %s19 = sadd.s32 %s18, 1
    %s20 = scalar_select %p17, %s18, %s19
    %p23 = pneg %p17
    %p24 = scmp.eq.s32.totalorder %s8, 3
    %p25 = por %p23, %p24
    %p26 = scmp.ne.s32.totalorder %s18, %s21
    %p27 = scmp.eq.s32.totalorder %s8, 0
    %p28 = por %p26, %p27
    %p29 = scmp.ne.s32.totalorder %s18, %s21
    %p30 = scmp.eq.s32.totalorder %s13, 3
    %p31 = por %p29, %p30
    %p32 = scmp.ne.s32.totalorder %s21, %s22
    %p33 = scmp.eq.s32.totalorder %s13, 0
    %p34 = por %p32, %p33
    %p35 = scmp.ne.s32.totalorder %s21, %s22
    %p36 = scmp.eq.s32.totalorder %s14, 3
    %p37 = por %p35, %p36
    %p39 = scmp.ne.s32.totalorder %s22, %s38
    %p40 = scmp.eq.s32.totalorder %s14, 0
    %p41 = por %p39, %p40
    %s43 = sadd.s32 %s42, 1
    %p46 = scmp.eq.s32.totalorder %s8, 3
    %p47 = scmp.ne.s32.totalorder %s42, %s44
    %p48 = scmp.eq.s32.totalorder %s8, 0
    %p49 = por %p47, %p48
    %p50 = scmp.ne.s32.totalorder %s42, %s44
    %p51 = scmp.eq.s32.totalorder %s13, 3
    %p52 = por %p50, %p51
    %p53 = scmp.ne.s32.totalorder %s44, %s45
    %p54 = scmp.eq.s32.totalorder %s13, 0
    %p55 = por %p53, %p54
    %p56 = scmp.ne.s32.totalorder %s44, %s45
    %p57 = scmp.eq.s32.totalorder %s14, 3
    %p58 = por %p56, %p57
    %p60 = scmp.ne.s32.totalorder %s45, %s59
    %p61 = scmp.eq.s32.totalorder %s14, 0
    %p62 = por %p60, %p61
    %s64 = sadd.s32 %s63, 1
    %p67 = scmp.eq.s32.totalorder %s8, 3
    %p68 = scmp.ne.s32.totalorder %s63, %s65
    %p69 = scmp.eq.s32.totalorder %s8, 0
    %p70 = por %p68, %p69
    %p71 = scmp.ne.s32.totalorder %s63, %s65
    %p72 = scmp.eq.s32.totalorder %s13, 3
    %p73 = por %p71, %p72
    %p74 = scmp.ne.s32.totalorder %s65, %s66
    %p75 = scmp.eq.s32.totalorder %s13, 0
    %p76 = por %p74, %p75
    %p77 = scmp.ne.s32.totalorder %s65, %s66
    %p78 = scmp.eq.s32.totalorder %s14, 3
    %p79 = por %p77, %p78
    %p81 = scmp.ne.s32.totalorder %s66, %s80
    %p82 = scmp.eq.s32.totalorder %s14, 0
    %p83 = por %p81, %p82
    %p84 = scmp.le.s32.totalorder 1, %s8
    %p85 = scmp.lt.s32.totalorder %s8, 5
    %p86 = pnand %p84, %p85
    %p87 = pneg %p86
    // Predicated region
    $region9: #{upsample_forward.2} parent=5 // pred_check
      _
    $region10: #{upsample_forward.2} parent=5 // pred_check_branch
      %89 = sbr.rel (%p86) target = $region12
    $region11: #{upsample_forward.2} parent=5 // pred_region
      %s90 = ssub.s32 %s8, 1
      // Predicated region
      $region13: #{upsample_forward.2} parent=11 // pred_check
        %p91 = pneg %p55
      $region14: #{upsample_forward.2} parent=11 // pred_check_branch
        %93 = sbr.rel (%p91) target = $region16
      $region15: #{upsample_forward.2} parent=11 // pred_region
        _
      $region16: #{upsample_forward.2} parent=11 // pred_fallthru
        _
    $region12: #{upsample_forward.2} parent=5 // pred_fallthru
      _
    %p94 = scmp.lt.s32.totalorder %s8, 4
    // Predicated region
    $region17: #{upsample_forward.2} parent=5 // pred_check
      %p95 = pneg %p94
    $region18: #{upsample_forward.2} parent=5 // pred_check_branch
      %97 = sbr.rel (%p95) target = $region20
    $region19: #{upsample_forward.2} parent=5 // pred_region
      // Predicated region
      $region21: #{upsample_forward.2} parent=19 // pred_check
        %p98 = pneg %p28
      $region22: #{upsample_forward.2} parent=19 // pred_check_branch
        %100 = sbr.rel (%p98) target = $region24
      $region23: #{upsample_forward.2} parent=19 // pred_region
        %p101 = scmp.lt.s32.totalorder %s8, 3
        %s102 = scalar_select %p101, %s8, 3
        %s103 = smul.addr %s102, 8
        %s104 = scalar_lea.vmem %s0, %s103
      $region24: #{upsample_forward.2} parent=19 // pred_fallthru
        _
    $region20: #{upsample_forward.2} parent=5 // pred_fallthru
      _
    %p105 = scmp.le.s32.totalorder 1, %s8
    %p106 = scmp.lt.s32.totalorder %s8, 5
    %p107 = pnand %p105, %p106
    %p108 = pneg %p107
    // Predicated region
    $region25: #{upsample_forward.2} parent=5 // pred_check
      _
    $region26: #{upsample_forward.2} parent=5 // pred_check_branch
      %110 = sbr.rel (%p107) target = $region28
    $region27: #{upsample_forward.2} parent=5 // pred_region
      %s111 = ssub.s32 %s8, 1
      %p112 = scmp.lt.s32.totalorder %s13, 3
      %s113 = scalar_select %p112, %s13, 3
      %s114 = smul.addr %s113, 8
      %s115 = scalar_lea.vmem %s0, %s114
      %p116 = pneg %p34
      %p117 = pneg %p31
      %p118 = pneg %p55
      %p119 = pneg %p52
      %p120 = pneg %p76
      %p121 = pneg %p73
      %p122 = scmp.lt.s32.totalorder %s13, 3
      %s123 = scalar_select %p122, %s13, 3
      %s124 = smul.addr %s123, 8
      %s125 = scalar_lea.vmem %s0, %s124
      %v126 = vld [vmem:[%s125] sm:$0xff]
      %v127 = vld [vmem:[%s1] sm:$0xff]
      %v128 = vld [vmem:[%s1 + $0x8] sm:$0xff]
      %v129 = vld [vmem:[%s1 + $0x10] sm:$0xff]
      %v130 = vld [vmem:[%s1 + $0x18] sm:$0xff]
      %v131 = vld [vmem:[%s1 + $0x20] sm:$0xff]
      %v132 = vld [vmem:[%s1 + $0x28] sm:$0xff]
      %v133 = vld [vmem:[%s1 + $0x30] sm:$0xff]
      %v134 = vld [vmem:[%s1 + $0x38] sm:$0xff]
      %v135 = vld [vmem:[%s1 + $0x40] sm:$0xff]
      %v136 = vld [vmem:[%s1 + $0x48] sm:$0xff]
      %v137 = vld [vmem:[%s1 + $0x50] sm:$0xff]
      %v138 = vld [vmem:[%s1 + $0x58] sm:$0xff]
      %v139 = vld [vmem:[%s1 + $0x60] sm:$0xff]
      %v140 = vld [vmem:[%s1 + $0x68] sm:$0xff]
      %v141 = vld [vmem:[%s1 + $0x70] sm:$0xff]
      %v142 = vld [vmem:[%s1 + $0x78] sm:$0xff]
      %v143 = vld [vmem:[%s1 + $0x80] sm:$0xff]
      %v144 = vld [vmem:[%s1 + $0x88] sm:$0xff]
      %v145 = vld [vmem:[%s1 + $0x90] sm:$0xff]
      %v146 = vld [vmem:[%s1 + $0x98] sm:$0xff]
      %v147 = vld [vmem:[%s1 + $0xa0] sm:$0xff]
      %v148 = vld [vmem:[%s1 + $0xa8] sm:$0xff]
      %v149 = vld [vmem:[%s1 + $0xb0] sm:$0xff]
      %v150 = vld [vmem:[%s1 + $0xb8] sm:$0xff]
      %v151 = vld [vmem:[%s1 + $0xc0] sm:$0xff]
      %v152 = vld [vmem:[%s1 + $0xc8] sm:$0xff]
      %v153 = vld [vmem:[%s1 + $0xd0] sm:$0xff]
      %v154 = vld [vmem:[%s1 + $0xd8] sm:$0xff]
      %v155 = vld [vmem:[%s1 + $0xe0] sm:$0xff]
      %v156 = vld [vmem:[%s1 + $0xe8] sm:$0xff]
      %v157 = vld [vmem:[%s1 + $0xf0] sm:$0xff]
      %v158 = vld [vmem:[%s1 + $0xf8] sm:$0xff]
      %159 = vmatprep.subr.mxu0 %v128
      %160 = vmatpush1.msra.mxu0 %v127
      %161 = vmatprep.subr.mxu0 %v130
      %162 = vmatpush1.msra.mxu0 %v129
      %163 = vmatprep.subr.mxu0 %v132
      %164 = vmatpush1.msra.mxu0 %v131
      %165 = vmatprep.subr.mxu0 %v134
      %166 = vmatpush1.msra.mxu0 %v133
      %167 = vmatprep.subr.mxu0 %v136
      %168 = vmatpush1.msra.mxu0 %v135
      %169 = vmatprep.subr.mxu0 %v138
      %170 = vmatpush1.msra.mxu0 %v137
      %171 = vmatprep.subr.mxu0 %v140
      %172 = vmatpush1.msra.mxu0 %v139
      %173 = vmatprep.subr.mxu0 %v142
      %174 = vmatpush1.msra.mxu0 %v141
      %175 = vmatprep.subr.mxu0 %v144
      %176 = vmatpush1.msra.mxu0 %v143
      %177 = vmatprep.subr.mxu0 %v146
      %178 = vmatpush1.msra.mxu0 %v145
      %179 = vmatprep.subr.mxu0 %v148
      %180 = vmatpush1.msra.mxu0 %v147
      %181 = vmatprep.subr.mxu0 %v150
      %182 = vmatpush1.msra.mxu0 %v149
      %183 = vmatprep.subr.mxu0 %v152
      %184 = vmatpush1.msra.mxu0 %v151
      %185 = vmatprep.subr.mxu0 %v154
      %186 = vmatpush1.msra.mxu0 %v153
      %187 = vmatprep.subr.mxu0 %v156
      %188 = vmatpush1.msra.mxu0 %v155
      %189 = vmatprep.subr.mxu0 %v158
      %190 = vmatpush1.msra.mxu0 %v157
      %191 = vmatprep.subr.mxu0 0.0
      %192 = vmatpush1.msra.mxu0 0.0
      %193 = vmatprep.subr.mxu0 0.0
      %194 = vmatpush1.msra.mxu0 0.0
      %195 = vmatprep.subr.mxu0 0.0
      %196 = vmatpush1.msra.mxu0 0.0
      %197 = vmatprep.subr.mxu0 0.0
      %198 = vmatpush1.msra.mxu0 0.0
      %199 = vmatprep.subr.mxu0 0.0
      %200 = vmatpush1.msra.mxu0 0.0
      %201 = vmatprep.subr.mxu0 0.0
      %202 = vmatpush1.msra.mxu0 0.0
      %203 = vmatprep.subr.mxu0 0.0
      %204 = vmatpush1.msra.mxu0 0.0
      %205 = vmatprep.subr.mxu0 0.0
      %206 = vmatpush1.msra.mxu0 0.0
      %207 = vmatprep.subr.mxu0 0.0
      %208 = vmatpush1.msra.mxu0 0.0
      %209 = vmatprep.subr.mxu0 0.0
      %210 = vmatpush1.msra.mxu0 0.0
      %211 = vmatprep.subr.mxu0 0.0
      %212 = vmatpush1.msra.mxu0 0.0
      %213 = vmatprep.subr.mxu0 0.0
      %214 = vmatpush1.msra.mxu0 0.0
      %215 = vmatprep.subr.mxu0 0.0
      %216 = vmatpush1.msra.mxu0 0.0
      %217 = vmatprep.subr.mxu0 0.0
      %218 = vmatpush1.msra.mxu0 0.0
      %219 = vmatprep.subr.mxu0 0.0
      %220 = vmatpush1.msra.mxu0 0.0
      %221 = vmatprep.subr.mxu0 0.0
      %222 = vmatpush1.msra.mxu0 0.0
      %223 = vmatprep.mubr.f32.mxu0 0.0
      %224 = vmatmul.mubr.f32.gmra.mrb[0].mxu0 %v126
      %v225 = vpop.f32.mrb[0].mxu0
      %v226 = vadd.f32 0.0, %v225
      %v227 = vpop.f32.mrb[0].mxu0
      %v228 = vadd.f32 0.0, %v227
      %229 = vdwg.mxu0
      %p230 = scmp.eq.s32.totalorder %s13, 0
      // Predicated region
      $region29: #{upsample_forward.2} parent=27 // pred_check
        %p231 = pneg %p230
      $region30: #{upsample_forward.2} parent=27 // pred_check_branch
        %233 = sbr.rel (%p231) target = $region32
      $region31: #{upsample_forward.2} parent=27 // pred_region
        %v234 = vrot.slane %v226, 4
        %v235 = vadd.f32 %v226, %v234
        %v236 = vrot.slane %v235, 2
        %v237 = vadd.f32 %v235, %v236
        %v238 = vrot.slane %v237, 1
        %v239 = vadd.f32 %v237, %v238
        %v240 = vrot.slane %v228, 4
        %v241 = vadd.f32 %v228, %v240
        %v242 = vrot.slane %v241, 2
        %v243 = vadd.f32 %v241, %v242
        %v244 = vrot.slane %v243, 1
        %v245 = vadd.f32 %v243, %v244
        %v246 = vrcp.pop 8.0
        %v247 = vmul.f32 %v239, %v246
        %v248 = vmul.f32 %v245, %v246
        %v251 = vcombine.low %v247, %v248
        %v253 = vunpack.c.l.s4 1966171168
        %v254 = vunpack.c.0.s8 %v253
        %v255 = vlaneseq
        %v256 = vshrl.u32 %v255, 7
        %v257 = vsub.s32 %v254, %v256
        %v258 = vrot.slane %v251, %v257
        %v260 = vunpack.c.l.s4 1966171168
        %v261 = vunpack.c.0.s8 %v260
        %v262 = vlaneseq
        %v263 = vshrl.u32 %v262, 7
        %v264 = vsub.s32 %v261, %v263
        %v265 = vrot.slane %v258, %v264
        %v267 = vlaneseq
        %vm268 = vcmp.ge.s32.totalorder %v267, 0
        %vm269 = vcmp.lt.s32.totalorder %v267, 256
        %vm270 = vmand %vm268, %vm269
        %271 = vst.msk [vmem:[%s2] ss:$4 sm:$0x3] %vm270, %v265
        %272 = vst [vmem:[%s2] sm:$0x66] 0.0
      $region32: #{upsample_forward.2} parent=27 // pred_fallthru
        _
      %v273 = vld [vmem:[%s2] ss:$4 sm:$0x3]
      %v275 = vlaneseq
      %v276 = vshrl.u32 %v275, 7
      %v277 = vsub.s32 0, %v276
      %v278 = vrot.slane %v273, %v277
      %v279 = vlaneseq
      %v280 = vshrl.u32 %v279, 7
      %v281 = vsub.s32 1, %v280
      %v282 = vrot.slane %v273, %v281
      %v285 = vsub.f32 %v226, %v278
      %v286 = vsub.f32 %v228, %v282
      %s287 = scalar_lea.vmem %s2, 1
      %v288 = vld [vmem:[%s287] ss:$4 sm:$0x3]
      %v289 = vrot.slane %v285, 4
      %v290 = vadd.f32 %v285, %v289
      %v291 = vrot.slane %v290, 2
      %v292 = vadd.f32 %v290, %v291
      %v293 = vrot.slane %v292, 1
      %v294 = vadd.f32 %v292, %v293
      %v295 = vrot.slane %v286, 4
      %v296 = vadd.f32 %v286, %v295
      %v297 = vrot.slane %v296, 2
      %v298 = vadd.f32 %v296, %v297
      %v299 = vrot.slane %v298, 1
      %v300 = vadd.f32 %v298, %v299
      %v303 = vcombine.low %v294, %v300
      %v305 = vunpack.c.l.s4 1966171168
      %v306 = vunpack.c.0.s8 %v305
      %v307 = vlaneseq
      %v308 = vshrl.u32 %v307, 7
      %v309 = vsub.s32 %v306, %v308
      %v310 = vrot.slane %v303, %v309
      %v312 = vunpack.c.l.s4 1966171168
      %v313 = vunpack.c.0.s8 %v312
      %v314 = vlaneseq
      %v315 = vshrl.u32 %v314, 7
      %v316 = vsub.s32 %v313, %v315
      %v317 = vrot.slane %v310, %v316
      %v319 = vadd.f32 %v288, %v317
      %v320 = vlaneseq
      %vm321 = vcmp.ge.s32.totalorder %v320, 0
      %vm322 = vcmp.lt.s32.totalorder %v320, 256
      %vm323 = vmand %vm321, %vm322
      %324 = vst.msk [vmem:[%s287] ss:$4 sm:$0x3] %vm323, %v319
      %s325 = scalar_lea.vmem %s2, 2
      %v326 = vld [vmem:[%s325] ss:$4 sm:$0x3]
      %v327 = vmul.f32 %v285, %v285
      %v328 = vmul.f32 %v286, %v286
      %v329 = vrot.slane %v327, 4
      %v330 = vadd.f32 %v327, %v329
      %v331 = vrot.slane %v330, 2
      %v332 = vadd.f32 %v330, %v331
      %v333 = vrot.slane %v332, 1
      %v334 = vadd.f32 %v332, %v333
      %v335 = vrot.slane %v328, 4
      %v336 = vadd.f32 %v328, %v335
      %v337 = vrot.slane %v336, 2
      %v338 = vadd.f32 %v336, %v337
      %v339 = vrot.slane %v338, 1
      %v340 = vadd.f32 %v338, %v339
      %v343 = vcombine.low %v334, %v340
      %v345 = vunpack.c.l.s4 1966171168
      %v346 = vunpack.c.0.s8 %v345
      %v347 = vlaneseq
      %v348 = vshrl.u32 %v347, 7
      %v349 = vsub.s32 %v346, %v348
      %v350 = vrot.slane %v343, %v349
      %v352 = vunpack.c.l.s4 1966171168
      %v353 = vunpack.c.0.s8 %v352
      %v354 = vlaneseq
      %v355 = vshrl.u32 %v354, 7
      %v356 = vsub.s32 %v353, %v355
      %v357 = vrot.slane %v350, %v356
      %v359 = vadd.f32 %v326, %v357
      %360 = vst.msk [vmem:[%s325] ss:$4 sm:$0x3] %vm323, %v359
      // Predicated region
      $region33: #{upsample_forward.2} parent=27 // pred_check
        %p361 = pneg %p73
      $region34: #{upsample_forward.2} parent=27 // pred_check_branch
        %363 = sbr.rel (%p361) target = $region36
      $region35: #{upsample_forward.2} parent=27 // pred_region
        _
      $region36: #{upsample_forward.2} parent=27 // pred_fallthru
        _
      // Predicated region
      $region37: #{upsample_forward.2} parent=27 // pred_check
        %p364 = pneg %p73
      $region38: #{upsample_forward.2} parent=27 // pred_check_branch
        %366 = sbr.rel (%p364) target = $region40
      $region39: #{upsample_forward.2} parent=27 // pred_region
        _
      $region40: #{upsample_forward.2} parent=27 // pred_fallthru
        _
    $region28: #{upsample_forward.2} parent=5 // pred_fallthru
      _
    %p367 = scmp.le.s32.totalorder 2, %s8
    // Predicated region
    $region41: #{upsample_forward.2} parent=5 // pred_check
      %p368 = pneg %p367
    $region42: #{upsample_forward.2} parent=5 // pred_check_branch
      %370 = sbr.rel (%p368) target = $region44
    $region43: #{upsample_forward.2} parent=5 // pred_region
      %s371 = ssub.s32 %s8, 2
    $region44: #{upsample_forward.2} parent=5 // pred_fallthru
      _
  $region6: #{upsample_forward.2} parent=0 // loop_footer
    %s12 = sadd.s32 1, %s8
  $region7: #{upsample_forward.2} parent=0 // loop_footer_branch
    %7 = sbr.rel target = $region3
  $region8: #{upsample_forward.2} parent=0 // loop_exit
    _

// kernel: upsample_forward.3
$region0: #{upsample_forward.3}
  #allocation0 [shape = 'u32[]', space=smem, size = 0x4, offset = 0x4, fixed_abs, tag = 'smem constant byte address 0x4 - core index']
  #allocation1 [shape = 'u32[144,128]{1,0:T(1,128)}', space=vmem, size = 0x12000, scoped, tag = 'internal scratch']
  %s0 = inlined_call_operand.vmem [shape: f32[2,16,128], index: 0, kind: input, shape index: {}]
  %s1 = inlined_call_operand.vmem [shape: f32[4,128,64], index: 1, kind: input, shape index: {}]
  %s2 = inlined_call_operand.vmem [shape: f32[4,1,64], index: 2, kind: input, shape index: {}]
  %s3 = inlined_call_operand.vmem [shape: f32[4,1,64], index: 3, kind: input, shape index: {}]
  %s4 = inlined_call_operand.vmem [shape: f32[2,4,16,64], index: 4, kind: output, shape index: {}]
  %s5 = sld [smem:[#allocation0]]
  $region49: #{upsample_forward.3} parent=0
    _
  %s7 = ssub.s32 1, %s5
  %s8 = scalar_select 0, %s7, %s5
  loop: start=0, step=1, limit=18
  $region2: #{upsample_forward.3} parent=0 // loop_pre_header
    _
  $region3: #{upsample_forward.3} parent=0 // loop_header
    %s10 = sphi 0, %s14
    %p11 = scmp.ge.s32.totalorder %s10, 18
    %s17 = sphi 0, %s36
    %s18 = sphi 0, %s32
    %s19 = sphi 0, %s28
    %s20 = sphi 0, %s17
    %s21 = sphi 0, %s18
    %s22 = sphi 0, %s19
    %s23 = sphi 0, %s20
    %s24 = sphi 0, %s21
    %s25 = sphi 0, %s22
    %s41 = sphi 0, %s43
    %s44 = sphi 0, %s41
    %s45 = sphi 0, %s44
    %s61 = sphi 0, %s45
    %s67 = sphi 0, %s69
    %s70 = sphi 0, %s67
    %s71 = sphi 0, %s70
    %s87 = sphi 0, %s71
    %s93 = sphi 0, %s95
    %s96 = sphi 0, %s93
    %s97 = sphi 0, %s96
    %s113 = sphi 0, %s97
    %s119 = sphi 0, %s121
    %s122 = sphi 0, %s119
    %s123 = sphi 0, %s122
    %s139 = sphi 0, %s123
    %s149 = sphi 0, %s151
    %s152 = sphi 0, %s149
    %s153 = sphi 0, %s152
    %s169 = sphi 0, %s153
  $region4: #{upsample_forward.3} parent=0 // loop_header_branch
    %13 = sbr.rel (%p11) target = $region8
  $region5: #{upsample_forward.3} parent=0 // loop_body
    %s15 = ssub.s32 %s10, 1
    %s16 = ssub.s32 %s10, 2
    %s26 = sadd.s32 1, %s19
    %p27 = scmp.ge.s32.totalorder %s26, 2
    %s28 = scalar_select %p27, 0, %s26
    %s29 = sadd.s32 1, %s18
    %s30 = scalar_select %p27, %s29, %s18
    %p31 = scmp.ge.s32.totalorder %s30, 4
    %s32 = scalar_select %p31, 0, %s30
    %s33 = sadd.s32 1, %s17
    %s34 = scalar_select %p31, %s33, %s17
    %p35 = scmp.ge.s32.totalorder %s34, 2
    %s36 = scalar_select %p35, 0, %s34
    %s37 = ssub.s32 %s17, %s36
    %s38 = ssub.s32 %s19, %s28
    %s39 = sor.u32 %s37, %s38
    %p40 = scmp.eq.s32.totalorder %s39, 0
    %s42 = sadd.s32 %s41, 1
    %s43 = scalar_select %p40, %s41, %s42
    %p46 = pneg %p40
    %p47 = scmp.eq.s32.totalorder %s10, 15
    %p48 = por %p46, %p47
    %p49 = scmp.ne.s32.totalorder %s41, %s44
    %p50 = scmp.eq.s32.totalorder %s10, 0
    %p51 = por %p49, %p50
    %p52 = scmp.ne.s32.totalorder %s41, %s44
    %p53 = scmp.eq.s32.totalorder %s15, 15
    %p54 = por %p52, %p53
    %p55 = scmp.ne.s32.totalorder %s44, %s45
    %p56 = scmp.eq.s32.totalorder %s15, 0
    %p57 = por %p55, %p56
    %p58 = scmp.ne.s32.totalorder %s44, %s45
    %p59 = scmp.eq.s32.totalorder %s16, 15
    %p60 = por %p58, %p59
    %p62 = scmp.ne.s32.totalorder %s45, %s61
    %p63 = scmp.eq.s32.totalorder %s16, 0
    %p64 = por %p62, %p63
    %s65 = ssub.s32 %s18, %s32
    %p66 = scmp.eq.s32.totalorder %s65, 0
    %s68 = sadd.s32 %s67, 1
    %s69 = scalar_select %p66, %s67, %s68
    %p72 = pneg %p66
    %p73 = scmp.eq.s32.totalorder %s10, 15
    %p74 = por %p72, %p73
    %p75 = scmp.ne.s32.totalorder %s67, %s70
    %p76 = scmp.eq.s32.totalorder %s10, 0
    %p77 = por %p75, %p76
    %p78 = scmp.ne.s32.totalorder %s67, %s70
    %p79 = scmp.eq.s32.totalorder %s15, 15
    %p80 = por %p78, %p79
    %p81 = scmp.ne.s32.totalorder %s70, %s71
    %p82 = scmp.eq.s32.totalorder %s15, 0
    %p83 = por %p81, %p82
    %p84 = scmp.ne.s32.totalorder %s70, %s71
    %p85 = scmp.eq.s32.totalorder %s16, 15
    %p86 = por %p84, %p85
    %p88 = scmp.ne.s32.totalorder %s71, %s87
    %p89 = scmp.eq.s32.totalorder %s16, 0
    %p90 = por %p88, %p89
    %s91 = ssub.s32 %s18, %s32
    %p92 = scmp.eq.s32.totalorder %s91, 0
    %s94 = sadd.s32 %s93, 1
    %s95 = scalar_select %p92, %s93, %s94
    %p98 = pneg %p92
    %p99 = scmp.eq.s32.totalorder %s10, 15
    %p100 = por %p98, %p99
    %p101 = scmp.ne.s32.totalorder %s93, %s96
    %p102 = scmp.eq.s32.totalorder %s10, 0
    %p103 = por %p101, %p102
    %p104 = scmp.ne.s32.totalorder %s93, %s96
    %p105 = scmp.eq.s32.totalorder %s15, 15
    %p106 = por %p104, %p105
    %p107 = scmp.ne.s32.totalorder %s96, %s97
    %p108 = scmp.eq.s32.totalorder %s15, 0
    %p109 = por %p107, %p108
    %p110 = scmp.ne.s32.totalorder %s96, %s97
    %p111 = scmp.eq.s32.totalorder %s16, 15
    %p112 = por %p110, %p111
    %p114 = scmp.ne.s32.totalorder %s97, %s113
    %p115 = scmp.eq.s32.totalorder %s16, 0
    %p116 = por %p114, %p115
    %s117 = ssub.s32 %s18, %s32
    %p118 = scmp.eq.s32.totalorder %s117, 0
    %s120 = sadd.s32 %s119, 1
    %s121 = scalar_select %p118, %s119, %s120
    %p124 = pneg %p118
    %p125 = scmp.eq.s32.totalorder %s10, 15
    %p126 = por %p124, %p125
    %p127 = scmp.ne.s32.totalorder %s119, %s122
    %p128 = scmp.eq.s32.totalorder %s10, 0
    %p129 = por %p127, %p128
    %p130 = scmp.ne.s32.totalorder %s119, %s122
    %p131 = scmp.eq.s32.totalorder %s15, 15
    %p132 = por %p130, %p131
    %p133 = scmp.ne.s32.totalorder %s122, %s123
    %p134 = scmp.eq.s32.totalorder %s15, 0
    %p135 = por %p133, %p134
    %p136 = scmp.ne.s32.totalorder %s122, %s123
    %p137 = scmp.eq.s32.totalorder %s16, 15
    %p138 = por %p136, %p137
    %p140 = scmp.ne.s32.totalorder %s123, %s139
    %p141 = scmp.eq.s32.totalorder %s16, 0
    %p142 = por %p140, %p141
    %s143 = ssub.s32 %s17, %s36
    %s144 = ssub.s32 %s18, %s32
    %s145 = sor.u32 %s143, %s144
    %s146 = ssub.s32 %s19, %s28
    %s147 = sor.u32 %s145, %s146
    %p148 = scmp.eq.s32.totalorder %s147, 0
    %s150 = sadd.s32 %s149, 1
    %s151 = scalar_select %p148, %s149, %s150
    %p154 = pneg %p148
    %p155 = scmp.eq.s32.totalorder %s10, 15
    %p156 = por %p154, %p155
    %p157 = scmp.ne.s32.totalorder %s149, %s152
    %p158 = scmp.eq.s32.totalorder %s10, 0
    %p159 = por %p157, %p158
    %p160 = scmp.ne.s32.totalorder %s149, %s152
    %p161 = scmp.eq.s32.totalorder %s15, 15
    %p162 = por %p160, %p161
    %p163 = scmp.ne.s32.totalorder %s152, %s153
    %p164 = scmp.eq.s32.totalorder %s15, 0
    %p165 = por %p163, %p164
    %p166 = scmp.ne.s32.totalorder %s152, %s153
    %p167 = scmp.eq.s32.totalorder %s16, 15
    %p168 = por %p166, %p167
    %p170 = scmp.ne.s32.totalorder %s153, %s169
    %p171 = scmp.eq.s32.totalorder %s16, 0
    %p172 = por %p170, %p171
    %p173 = scmp.le.s32.totalorder 1, %s10
    %p174 = scmp.lt.s32.totalorder %s10, 17
    %p175 = pnand %p173, %p174
    %p176 = pneg %p175
    // Predicated region
    $region9: #{upsample_forward.3} parent=5 // pred_check
      _
    $region10: #{upsample_forward.3} parent=5 // pred_check_branch
      %178 = sbr.rel (%p175) target = $region12
    $region11: #{upsample_forward.3} parent=5 // pred_region
      %s179 = ssub.s32 %s10, 1
    $region12: #{upsample_forward.3} parent=5 // pred_fallthru
      _
    %p180 = scmp.lt.s32.totalorder %s10, 16
    // Predicated region
    $region13: #{upsample_forward.3} parent=5 // pred_check
      %p181 = pneg %p180
    $region14: #{upsample_forward.3} parent=5 // pred_check_branch
      %183 = sbr.rel (%p181) target = $region16
    $region15: #{upsample_forward.3} parent=5 // pred_region
      // Predicated region
      $region17: #{upsample_forward.3} parent=15 // pred_check
        %p184 = pneg %p51
      $region18: #{upsample_forward.3} parent=15 // pred_check_branch
        %186 = sbr.rel (%p184) target = $region20
      $region19: #{upsample_forward.3} parent=15 // pred_region
        %p187 = scmp.lt.s32.totalorder %s17, 1
        %s188 = scalar_select %p187, %s17, 1
        %p189 = scmp.lt.s32.totalorder %s19, 1
        %s190 = scalar_select %p189, %s19, 1
        %s191 = smul.addr %s188, 2
        %s192 = sadd.s32 %s190, %s191
        %s193 = smul.addr %s192, 8
        %s194 = scalar_lea.vmem %s0, %s193
      $region20: #{upsample_forward.3} parent=15 // pred_fallthru
        _
      // Predicated region
      $region21: #{upsample_forward.3} parent=15 // pred_check
        %p195 = pneg %p77
      $region22: #{upsample_forward.3} parent=15 // pred_check_branch
        %197 = sbr.rel (%p195) target = $region24
      $region23: #{upsample_forward.3} parent=15 // pred_region
        %p198 = scmp.lt.s32.totalorder %s18, 3
        %s199 = scalar_select %p198, %s18, 3
        %s200 = smul.addr %s199, 16
        %s201 = smul.addr %s200, 8
        %s202 = scalar_lea.vmem %s1, %s201
      $region24: #{upsample_forward.3} parent=15 // pred_fallthru
        _
      // Predicated region
      $region25: #{upsample_forward.3} parent=15 // pred_check
        %p203 = pneg %p103
      $region26: #{upsample_forward.3} parent=15 // pred_check_branch
        %205 = sbr.rel (%p203) target = $region28
      $region27: #{upsample_forward.3} parent=15 // pred_region
        %p206 = scmp.lt.s32.totalorder %s18, 3
        %s207 = scalar_select %p206, %s18, 3
        %s208 = scalar_lea.vmem %s2, %s207
      $region28: #{upsample_forward.3} parent=15 // pred_fallthru
        _
      // Predicated region
      $region29: #{upsample_forward.3} parent=15 // pred_check
        %p209 = pneg %p129
      $region30: #{upsample_forward.3} parent=15 // pred_check_branch
        %211 = sbr.rel (%p209) target = $region32
      $region31: #{upsample_forward.3} parent=15 // pred_region
        %p212 = scmp.lt.s32.totalorder %s18, 3
        %s213 = scalar_select %p212, %s18, 3
        %s214 = scalar_lea.vmem %s3, %s213
      $region32: #{upsample_forward.3} parent=15 // pred_fallthru
        _
    $region16: #{upsample_forward.3} parent=5 // pred_fallthru
      _
    %p215 = scmp.le.s32.totalorder 1, %s10
    %p216 = scmp.lt.s32.totalorder %s10, 17
    %p217 = pnand %p215, %p216
    %p218 = pneg %p217
    // Predicated region
    $region33: #{upsample_forward.3} parent=5 // pred_check
      _
    $region34: #{upsample_forward.3} parent=5 // pred_check_branch
      %220 = sbr.rel (%p217) target = $region36
    $region35: #{upsample_forward.3} parent=5 // pred_region
      %s221 = ssub.s32 %s10, 1
      %p222 = scmp.lt.s32.totalorder %s20, 1
      %s223 = scalar_select %p222, %s20, 1
      %p224 = scmp.lt.s32.totalorder %s22, 1
      %s225 = scalar_select %p224, %s22, 1
      %s226 = smul.addr %s223, 2
      %s227 = sadd.s32 %s225, %s226
      %s228 = smul.addr %s227, 8
      %s229 = scalar_lea.vmem %s0, %s228
      %p230 = pneg %p57
      %p231 = pneg %p54
      %p232 = scmp.lt.s32.totalorder %s21, 3
      %s233 = scalar_select %p232, %s21, 3
      %s234 = smul.addr %s233, 16
      %s235 = smul.addr %s234, 8
      %s236 = scalar_lea.vmem %s1, %s235
      %p237 = pneg %p83
      %p238 = pneg %p80
      %p239 = scmp.lt.s32.totalorder %s21, 3
      %s240 = scalar_select %p239, %s21, 3
      %s241 = scalar_lea.vmem %s2, %s240
      %p242 = pneg %p109
      %p243 = pneg %p106
      %p244 = scmp.lt.s32.totalorder %s21, 3
      %s245 = scalar_select %p244, %s21, 3
      %s246 = scalar_lea.vmem %s3, %s245
      %p247 = pneg %p135
      %p248 = pneg %p132
      %p249 = pneg %p165
      %p250 = pneg %p162
      %p251 = scmp.lt.s32.totalorder %s20, 1
      %s252 = scalar_select %p251, %s20, 1
      %p253 = scmp.lt.s32.totalorder %s21, 3
      %s254 = scalar_select %p253, %s21, 3
      %p255 = scmp.lt.s32.totalorder %s22, 1
      %s256 = scalar_select %p255, %s22, 1
      %s257 = smul.addr %s254, 2
      %s258 = sadd.s32 %s256, %s257
      %s259 = smul.addr %s252, 8
      %s260 = sadd.s32 %s258, %s259
      %s261 = smul.addr %s260, 8
      %s262 = scalar_lea.vmem %s4, %s261
      %p263 = scmp.lt.s32.totalorder %s20, 1
      %s264 = scalar_select %p263, %s20, 1
      %p265 = scmp.lt.s32.totalorder %s22, 1
      %s266 = scalar_select %p265, %s22, 1
      %s267 = smul.addr %s264, 2
      %s268 = sadd.s32 %s266, %s267
      %s269 = smul.addr %s268, 8
      %s270 = scalar_lea.vmem %s0, %s269
      %p271 = scmp.lt.s32.totalorder %s21, 3
      %s272 = scalar_select %p271, %s21, 3
      %s273 = smul.addr %s272, 16
      %s274 = smul.addr %s273, 8
      %s275 = scalar_lea.vmem %s1, %s274
      %p276 = scmp.lt.s32.totalorder %s21, 3
      %s277 = scalar_select %p276, %s21, 3
      %s278 = scalar_lea.vmem %s2, %s277
      %p279 = scmp.lt.s32.totalorder %s21, 3
      %s280 = scalar_select %p279, %s21, 3
      %s281 = scalar_lea.vmem %s3, %s280
      %p282 = scmp.lt.s32.totalorder %s20, 1
      %s283 = scalar_select %p282, %s20, 1
      %p284 = scmp.lt.s32.totalorder %s21, 3
      %s285 = scalar_select %p284, %s21, 3
      %p286 = scmp.lt.s32.totalorder %s22, 1
      %s287 = scalar_select %p286, %s22, 1
      %s288 = smul.addr %s285, 2
      %s289 = sadd.s32 %s287, %s288
      %s290 = smul.addr %s283, 8
      %s291 = sadd.s32 %s289, %s290
      %s292 = smul.addr %s291, 8
      %s293 = scalar_lea.vmem %s4, %s292
      %v294 = vld [vmem:[%s270] sm:$0xff]
      %v295 = vld [vmem:[%s275] sm:$0xff]
      %v296 = vld [vmem:[%s275 + $0x8] sm:$0xff]
      %v297 = vld [vmem:[%s275 + $0x10] sm:$0xff]
      %v298 = vld [vmem:[%s275 + $0x18] sm:$0xff]
      %v299 = vld [vmem:[%s275 + $0x20] sm:$0xff]
      %v300 = vld [vmem:[%s275 + $0x28] sm:$0xff]
      %v301 = vld [vmem:[%s275 + $0x30] sm:$0xff]
      %v302 = vld [vmem:[%s275 + $0x38] sm:$0xff]
      %v303 = vld [vmem:[%s275 + $0x40] sm:$0xff]
      %v304 = vld [vmem:[%s275 + $0x48] sm:$0xff]
      %v305 = vld [vmem:[%s275 + $0x50] sm:$0xff]
      %v306 = vld [vmem:[%s275 + $0x58] sm:$0xff]
      %v307 = vld [vmem:[%s275 + $0x60] sm:$0xff]
      %v308 = vld [vmem:[%s275 + $0x68] sm:$0xff]
      %v309 = vld [vmem:[%s275 + $0x70] sm:$0xff]
      %v310 = vld [vmem:[%s275 + $0x78] sm:$0xff]
      %311 = vmatprep.subr.mxu0 0.0
      %312 = vmatpush1.msra.mxu0 %v295
      %313 = vmatprep.subr.mxu0 0.0
      %314 = vmatpush1.msra.mxu0 %v296
      %315 = vmatprep.subr.mxu0 0.0
      %316 = vmatpush1.msra.mxu0 %v297
      %317 = vmatprep.subr.mxu0 0.0
      %318 = vmatpush1.msra.mxu0 %v298
      %319 = vmatprep.subr.mxu0 0.0
      %320 = vmatpush1.msra.mxu0 %v299
      %321 = vmatprep.subr.mxu0 0.0
      %322 = vmatpush1.msra.mxu0 %v300
      %323 = vmatprep.subr.mxu0 0.0
      %324 = vmatpush1.msra.mxu0 %v301
      %325 = vmatprep.subr.mxu0 0.0
      %326 = vmatpush1.msra.mxu0 %v302
      %327 = vmatprep.subr.mxu0 0.0
      %328 = vmatpush1.msra.mxu0 %v303
      %329 = vmatprep.subr.mxu0 0.0
      %330 = vmatpush1.msra.mxu0 %v304
      %331 = vmatprep.subr.mxu0 0.0
      %332 = vmatpush1.msra.mxu0 %v305
      %333 = vmatprep.subr.mxu0 0.0
      %334 = vmatpush1.msra.mxu0 %v306
      %335 = vmatprep.subr.mxu0 0.0
      %336 = vmatpush1.msra.mxu0 %v307
      %337 = vmatprep.subr.mxu0 0.0
      %338 = vmatpush1.msra.mxu0 %v308
      %339 = vmatprep.subr.mxu0 0.0
      %340 = vmatpush1.msra.mxu0 %v309
      %341 = vmatprep.subr.mxu0 0.0
      %342 = vmatpush1.msra.mxu0 %v310
      %343 = vmatprep.subr.mxu0 0.0
      %344 = vmatpush1.msra.mxu0 0.0
      %345 = vmatprep.subr.mxu0 0.0
      %346 = vmatpush1.msra.mxu0 0.0
      %347 = vmatprep.subr.mxu0 0.0
      %348 = vmatpush1.msra.mxu0 0.0
      %349 = vmatprep.subr.mxu0 0.0
      %350 = vmatpush1.msra.mxu0 0.0
      %351 = vmatprep.subr.mxu0 0.0
      %352 = vmatpush1.msra.mxu0 0.0
      %353 = vmatprep.subr.mxu0 0.0
      %354 = vmatpush1.msra.mxu0 0.0
      %355 = vmatprep.subr.mxu0 0.0
      %356 = vmatpush1.msra.mxu0 0.0
      %357 = vmatprep.subr.mxu0 0.0
      %358 = vmatpush1.msra.mxu0 0.0
      %359 = vmatprep.subr.mxu0 0.0
      %360 = vmatpush1.msra.mxu0 0.0
      %361 = vmatprep.subr.mxu0 0.0
      %362 = vmatpush1.msra.mxu0 0.0
      %363 = vmatprep.subr.mxu0 0.0
      %364 = vmatpush1.msra.mxu0 0.0
      %365 = vmatprep.subr.mxu0 0.0
      %366 = vmatpush1.msra.mxu0 0.0
      %367 = vmatprep.subr.mxu0 0.0
      %368 = vmatpush1.msra.mxu0 0.0
      %369 = vmatprep.subr.mxu0 0.0
      %370 = vmatpush1.msra.mxu0 0.0
      %371 = vmatprep.subr.mxu0 0.0
      %372 = vmatpush1.msra.mxu0 0.0
      %373 = vmatprep.subr.mxu0 0.0
      %374 = vmatpush1.msra.mxu0 0.0
      %375 = vmatprep.mubr.f32.mxu0 0.0
      %376 = vmatmul.mubr.f32.gmra.mrb[0].mxu0 %v294
      %v377 = vpop.f32.mrb[0].mxu0
      %v378 = vadd.f32 0.0, %v377
      %v379 = vpop.f32.mrb[0].mxu0
      %380 = vdwg.mxu0
      %v381 = vld [vmem:[%s278] sm:$0x1]
      %v383 = vlaneseq
      %v384 = vshrl.u32 %v383, 7
      %v385 = vsub.s32 0, %v384
      %v386 = vrot.slane %v381, %v385
      %v388 = vmul.f32 %v378, %v386
      %v389 = vld [vmem:[%s281] sm:$0x1]
      %v391 = vlaneseq
      %v392 = vshrl.u32 %v391, 7
      %v393 = vsub.s32 0, %v392
      %v394 = vrot.slane %v389, %v393
      %v396 = vadd.f32 %v388, %v394
      %v397 = vmax.f32 %v396, 0.0
      %vm398 = vcmask 523264
      %399 = vst.msk [vmem:[%s293] sm:$0xff] %vm398, %v397
      %p400 = scmp.lt.s32.totalorder %s20, 1
      %s401 = scalar_select %p400, %s20, 1
      %p402 = scmp.lt.s32.totalorder %s21, 3
      %s403 = scalar_select %p402, %s21, 3
      %p404 = scmp.lt.s32.totalorder %s22, 1
      %s405 = scalar_select %p404, %s22, 1
      %s406 = smul.addr %s403, 2
      %s407 = sadd.s32 %s405, %s406
      %s408 = smul.addr %s401, 8
      %s409 = sadd.s32 %s407, %s408
      %s410 = smul.addr %s409, 8
      %s411 = scalar_lea.vmem %s4, %s410
      // Predicated region
      $region37: #{upsample_forward.3} parent=35 // pred_check
        %p412 = pneg %p162
      $region38: #{upsample_forward.3} parent=35 // pred_check_branch
        %414 = sbr.rel (%p412) target = $region40
      $region39: #{upsample_forward.3} parent=35 // pred_region
        _
      $region40: #{upsample_forward.3} parent=35 // pred_fallthru
        _
    $region36: #{upsample_forward.3} parent=5 // pred_fallthru
      _
    %p415 = scmp.le.s32.totalorder 2, %s10
    // Predicated region
    $region41: #{upsample_forward.3} parent=5 // pred_check
      %p416 = pneg %p415
    $region42: #{upsample_forward.3} parent=5 // pred_check_branch
      %418 = sbr.rel (%p416) target = $region44
    $region43: #{upsample_forward.3} parent=5 // pred_region
      %s419 = ssub.s32 %s10, 2
      // Predicated region
      $region45: #{upsample_forward.3} parent=43 // pred_check
        %p420 = pneg %p168
      $region46: #{upsample_forward.3} parent=43 // pred_check_branch
        %422 = sbr.rel (%p420) target = $region48
      $region47: #{upsample_forward.3} parent=43 // pred_region
        %p423 = scmp.lt.s32.totalorder %s23, 1
        %s424 = scalar_select %p423, %s23, 1
        %p425 = scmp.lt.s32.totalorder %s24, 3
        %s426 = scalar_select %p425, %s24, 3
        %p427 = scmp.lt.s32.totalorder %s25, 1
        %s428 = scalar_select %p427, %s25, 1
        %s429 = smul.addr %s426, 2
        %s430 = sadd.s32 %s428, %s429
        %s431 = smul.addr %s424, 8
        %s432 = sadd.s32 %s430, %s431
        %s433 = smul.addr %s432, 8
        %s434 = scalar_lea.vmem %s4, %s433
      $region48: #{upsample_forward.3} parent=43 // pred_fallthru
        _
    $region44: #{upsample_forward.3} parent=5 // pred_fallthru
      _
  $region6: #{upsample_forward.3} parent=0 // loop_footer
    %s14 = sadd.s32 1, %s10
  $region7: #{upsample_forward.3} parent=0 // loop_footer_branch
    %9 = sbr.rel target = $region3
  $region8: #{upsample_forward.3} parent=0 // loop_exit
    _

</llo_original>
